<compile_context>
chip_gen: v7x
topology: tpu7x:2x2x1
jax: 0.10.0
libtpu: 0.0.40
codegen_flags: <defaults>
</compile_context>

<pallas_src>
import functools

import jax
import jax.numpy as jnp
import numpy as np
from jax.experimental import pallas as pl
from jax.experimental.pallas import tpu as pltpu


def _dblock_kernel(p_ref, w_ref, b_ref, o_ref, *,
                   lrn_size, lrn_alpha, lrn_beta, lrn_k):
    """Single grid step, all batch elements folded into lanes.

    p_ref: (Kpad, 4*N*Ho*Wo)   im2col patches, fused-K rows, parity-major columns
    w_ref: (Cout, Kpad)        conv weights, fused K (zero-padded to Kpad)
    b_ref: (Cout, 1)           conv bias (lane-broadcast)
    o_ref: (Cout, N*Ho*Wo)     pooled output (lane-dense, 128 lanes)
    """
    c_out = w_ref.shape[0]

    # ---- Conv2d('same') for ALL batch elements as ONE fused-K MXU matmul ----
    y = jnp.dot(w_ref[...], p_ref[...], preferred_element_type=jnp.float32)

    # ---- bias + ReLU (VPU) ----
    y = jnp.maximum(y + b_ref[...], 0.0)

    # ---- LocalResponseNorm over the channel (sublane) dim ----
    # Exact clipped window sum (torch zero-pads the channel axis) via a tiny 0/1
    # band matrix built in-kernel (runs once: single grid step).
    c_idx = jax.lax.broadcasted_iota(jnp.int32, (c_out, c_out), 0)   # target channel
    j_idx = jax.lax.broadcasted_iota(jnp.int32, (c_out, c_out), 1)   # source channel
    band = ((j_idx >= c_idx - lrn_size // 2) &
            (j_idx <= c_idx + (lrn_size - 1) // 2)).astype(jnp.float32)
    wsum = jnp.dot(band, y * y, preferred_element_type=jnp.float32)
    base = lrn_k + (lrn_alpha / lrn_size) * wsum
    if lrn_beta == 0.75:
        inv = jax.lax.rsqrt(base) * jax.lax.rsqrt(jnp.sqrt(base))    # base**-0.75 on EUP
    else:
        inv = jnp.exp(-lrn_beta * jnp.log(base))
    y = y * inv

    # ---- MaxPool2d(2,2): parity-major columns -> four contiguous lane quarters,
    # each exactly N*Ho*Wo (=128) lanes -> pure full-vreg VPU elementwise max. ----
    q = y.shape[-1] // 4
    o_ref[...] = jnp.maximum(jnp.maximum(y[:, 0 * q:1 * q], y[:, 1 * q:2 * q]),
                             jnp.maximum(y[:, 2 * q:3 * q], y[:, 3 * q:4 * q]))


@functools.partial(jax.jit,
                   static_argnames=("lrn_size", "lrn_alpha", "lrn_beta", "lrn_k"))
def dblock_forward(x_nchw, weight, bias, *, lrn_size,
                   lrn_alpha=1e-4, lrn_beta=0.75, lrn_k=1.0):
    """Pallas implementation of DBlock.forward. x_nchw: (N, Cin, H, W) float32."""
    n, c_in, h, w = x_nchw.shape
    c_out, _, kh, kw = weight.shape
    assert h % 2 == 0 and w % 2 == 0, "MaxPool2d(2,2) expects even spatial dims here"
    ho, wo = h // 2, w // 2
    cols = 4 * n * ho * wo            # = N*H*W (parity-major column count)
    k_fused = kh * kw * c_in
    k_pad = ((k_fused + 7) // 8) * 8  # sublane-align the fused contraction dim

    # ---- wrapper-side layout glue (fused by XLA under jit) --------------------------
    # PyTorch 'same' padding (stride 1)
    ph_lo, ph_hi = (kh - 1) // 2, (kh - 1) - (kh - 1) // 2
    pw_lo, pw_hi = (kw - 1) // 2, (kw - 1) - (kw - 1) // 2

    x = x_nchw.astype(jnp.float32)
    xp = jnp.pad(x, ((0, 0), (0, 0), (ph_lo, ph_hi), (pw_lo, pw_hi)))

    # im2col with fused K = (ky,kx,cin) rows; batch folded into lanes; columns ordered
    # parity-major:  col = ((h%2)*2 + (w%2)) * (N*Ho*Wo) + b*Ho*Wo + (h//2)*Wo + (w//2)
    taps = jnp.stack([xp[:, :, ky:ky + h, kx:kx + w]
                      for ky in range(kh) for kx in range(kw)], axis=1)  # (N,K,Cin,H,W)
    taps = taps.reshape(n, kh * kw, c_in, ho, 2, wo, 2)
    taps = jnp.transpose(taps, (1, 2, 4, 6, 0, 3, 5))                    # (K,Cin,2,2,N,Ho,Wo)
    patches = taps.reshape(k_fused, cols)
    patches = jnp.pad(patches, ((0, k_pad - k_fused), (0, 0)))           # zero rows -> Kpad

    w2 = jnp.transpose(weight, (0, 2, 3, 1)).reshape(c_out, k_fused).astype(jnp.float32)
    w2 = jnp.pad(w2, ((0, 0), (0, k_pad - k_fused)))                     # zero cols -> Kpad
    b_col = bias.reshape(c_out, 1).astype(jnp.float32)

    # ---- Pallas call (single grid step) ----------------------------------------------
    kernel = functools.partial(
        _dblock_kernel, lrn_size=int(lrn_size), lrn_alpha=float(lrn_alpha),
        lrn_beta=float(lrn_beta), lrn_k=float(lrn_k))

    out = pl.pallas_call(
        kernel,
        out_shape=jax.ShapeDtypeStruct((c_out, n * ho * wo), jnp.float32),
        grid_spec=pltpu.PrefetchScalarGridSpec(
            num_scalar_prefetch=0,
            grid=(1,),
            in_specs=[
                pl.BlockSpec((k_pad, cols), lambda i: (0, 0)),
                pl.BlockSpec((c_out, k_pad), lambda i: (0, 0)),
                pl.BlockSpec((c_out, 1), lambda i: (0, 0)),
            ],
            out_specs=pl.BlockSpec((c_out, n * ho * wo), lambda i: (0, 0)),
        ),
        compiler_params=pltpu.CompilerParams(dimension_semantics=("arbitrary",)),
    )(patches, w2, b_col)

    # (Cout, N*Ho*Wo) -> NCHW
    return jnp.transpose(out.reshape(c_out, n, ho, wo), (1, 0, 2, 3))


def dblock_reference(x_nchw, weight, bias, *, lrn_size,
                     lrn_alpha=1e-4, lrn_beta=0.75, lrn_k=1.0):
    """Pure-JAX reference matching torch semantics."""
    n, c_in, h, w = x_nchw.shape
    c_out, _, kh, kw = weight.shape
    ph_lo, ph_hi = (kh - 1) // 2, (kh - 1) - (kh - 1) // 2
    pw_lo, pw_hi = (kw - 1) // 2, (kw - 1) - (kw - 1) // 2
    y = jax.lax.conv_general_dilated(
        x_nchw, weight, window_strides=(1, 1),
        padding=[(ph_lo, ph_hi), (pw_lo, pw_hi)],
        dimension_numbers=("NCHW", "OIHW", "NCHW"))
    y = y + bias[None, :, None, None]
    y = jnp.maximum(y, 0.0)
    # LRN (torch.nn.LocalResponseNorm): zero-pad channel dim, averaged window of y^2
    sq = y * y
    sq_pad = jnp.pad(sq, ((0, 0), (lrn_size // 2, (lrn_size - 1) // 2), (0, 0), (0, 0)))
    wsum = sum(sq_pad[:, c:c + c_out] for c in range(lrn_size))
    y = y / (lrn_k + (lrn_alpha / lrn_size) * wsum) ** lrn_beta
    # MaxPool2d((2,2))
    ho, wo = h // 2, w // 2
    return y.reshape(n, c_out, ho, 2, wo, 2).max(axis=(3, 5))


if __name__ == "__main__":
    # Small shapes consistent with the module: N=2, Cin=4, Cout=8, 16x16, 3x3 conv.
    N, CIN, COUT, H, W, K = 2, 4, 8, 16, 16, 3

    key = jax.random.PRNGKey(0)
    kx, kw_, kb = jax.random.split(key, 3)
    x = jax.random.normal(kx, (N, CIN, H, W), dtype=jnp.float32)
    weight = 0.1 * jax.random.normal(kw_, (COUT, CIN, K, K), dtype=jnp.float32)
    bias = 0.1 * jax.random.normal(kb, (COUT,), dtype=jnp.float32)

    out = dblock_forward(x, weight, bias, lrn_size=COUT)
    out = jax.block_until_ready(out)

    ref = dblock_reference(x, weight, bias, lrn_size=COUT)
    np.testing.assert_allclose(np.asarray(out), np.asarray(ref), rtol=1e-5, atol=1e-5)
    assert out.shape == (N, COUT, H // 2, W // 2)

    print("KERNEL_OK")
</pallas_src>

<mosaic_0001>
module attributes {stable_mosaic.version = 11 : i64} {
  func.func @_dblock_kernel(%arg0: i32, %arg1: memref<40x512xf32, #tpu.memory_space<vmem>>, %arg2: memref<8x40xf32, #tpu.memory_space<vmem>>, %arg3: memref<8x1xf32, #tpu.memory_space<vmem>>, %arg4: memref<8x128xf32, #tpu.memory_space<vmem>>) attributes {dimension_semantics = [#tpu.dimension_semantics<arbitrary>], iteration_bounds = array<i64: 1>, scalar_prefetch = 0 : i64, scratch_operands = 0 : i64, tpu.core_type = #tpu.core_type<tc>, window_params = [{pipeline_mode = #tpu.pipeline_mode<synchronous>, transform_indices = @transform_0, window_bounds = array<i64: 40, 512>}, {pipeline_mode = #tpu.pipeline_mode<synchronous>, transform_indices = @transform_1, window_bounds = array<i64: 8, 40>}, {pipeline_mode = #tpu.pipeline_mode<synchronous>, transform_indices = @transform_2, window_bounds = array<i64: 8, 1>}, {pipeline_mode = #tpu.pipeline_mode<synchronous>, transform_indices = @transform_3, window_bounds = array<i64: 8, 128>}]} {
    %c0 = arith.constant 0 : index
    %c0_0 = arith.constant 0 : index
    %0 = vector.load %arg2[%c0, %c0_0] : memref<8x40xf32, #tpu.memory_space<vmem>>, vector<8x40xf32>
    %c0_1 = arith.constant 0 : index
    %c0_2 = arith.constant 0 : index
    %1 = vector.load %arg1[%c0_1, %c0_2] : memref<40x512xf32, #tpu.memory_space<vmem>>, vector<40x512xf32>
    %cst = arith.constant dense<0.000000e+00> : vector<8x512xf32>
    %2 = tpu.matmul %0, %1, %cst {dimension_numbers = #tpu.dot_dimension_numbers<[1], [0], [0], [1], [0, 0, 1, 1], [], []>} : vector<8x40xf32>, vector<40x512xf32>, vector<8x512xf32> -> vector<8x512xf32>
    %c0_3 = arith.constant 0 : index
    %c0_4 = arith.constant 0 : index
    %3 = vector.load %arg3[%c0_3, %c0_4] : memref<8x1xf32, #tpu.memory_space<vmem>>, vector<8x1xf32>
    %4 = vector.broadcast %3 : vector<8x1xf32> to vector<8x512xf32>
    %5 = arith.addf %2, %4 : vector<8x512xf32>
    %cst_5 = arith.constant 0.000000e+00 : f32
    %6 = vector.broadcast %cst_5 : f32 to vector<8x512xf32>
    %7 = arith.maximumf %5, %6 : vector<8x512xf32>
    %8 = tpu.iota {dimensions = array<i32: 0>} : vector<8x8xi32>
    %9 = tpu.iota {dimensions = array<i32: 1>} : vector<8x8xi32>
    %c4_i32 = arith.constant 4 : i32
    %10 = vector.broadcast %c4_i32 : i32 to vector<8x8xi32>
    %11 = arith.subi %8, %10 : vector<8x8xi32>
    %12 = arith.cmpi sge, %9, %11 : vector<8x8xi32>
    %c3_i32 = arith.constant 3 : i32
    %13 = vector.broadcast %c3_i32 : i32 to vector<8x8xi32>
    %14 = arith.addi %8, %13 : vector<8x8xi32>
    %15 = arith.cmpi sle, %9, %14 : vector<8x8xi32>
    %16 = arith.andi %12, %15 : vector<8x8xi1>
    %17 = arith.extui %16 : vector<8x8xi1> to vector<8x8xi32>
    %18 = arith.sitofp %17 : vector<8x8xi32> to vector<8x8xf32>
    %19 = arith.mulf %7, %7 : vector<8x512xf32>
    %cst_6 = arith.constant dense<0.000000e+00> : vector<8x512xf32>
    %20 = tpu.matmul %18, %19, %cst_6 {dimension_numbers = #tpu.dot_dimension_numbers<[1], [0], [0], [1], [0, 0, 1, 1], [], []>} : vector<8x8xf32>, vector<8x512xf32>, vector<8x512xf32> -> vector<8x512xf32>
    %cst_7 = arith.constant 1.250000e-05 : f32
    %21 = vector.broadcast %cst_7 : f32 to vector<8x512xf32>
    %22 = arith.mulf %21, %20 : vector<8x512xf32>
    %cst_8 = arith.constant 1.000000e+00 : f32
    %23 = vector.broadcast %cst_8 : f32 to vector<8x512xf32>
    %24 = arith.addf %23, %22 : vector<8x512xf32>
    %25 = math.rsqrt %24 : vector<8x512xf32>
    %26 = math.sqrt %24 : vector<8x512xf32>
    %27 = math.rsqrt %26 : vector<8x512xf32>
    %28 = arith.mulf %25, %27 : vector<8x512xf32>
    %29 = arith.mulf %7, %28 : vector<8x512xf32>
    %30 = vector.extract_strided_slice %29 {offsets = [0, 0], sizes = [8, 128], strides = [1, 1]} : vector<8x512xf32> to vector<8x128xf32>
    %31 = vector.extract_strided_slice %29 {offsets = [0, 128], sizes = [8, 128], strides = [1, 1]} : vector<8x512xf32> to vector<8x128xf32>
    %32 = arith.maximumf %30, %31 : vector<8x128xf32>
    %33 = vector.extract_strided_slice %29 {offsets = [0, 256], sizes = [8, 128], strides = [1, 1]} : vector<8x512xf32> to vector<8x128xf32>
    %34 = vector.extract_strided_slice %29 {offsets = [0, 384], sizes = [8, 128], strides = [1, 1]} : vector<8x512xf32> to vector<8x128xf32>
    %35 = arith.maximumf %33, %34 : vector<8x128xf32>
    %36 = arith.maximumf %32, %35 : vector<8x128xf32>
    %c0_9 = arith.constant 0 : index
    %c0_10 = arith.constant 0 : index
    %37 = vector.load %arg4[%c0_9, %c0_10] : memref<8x128xf32, #tpu.memory_space<vmem>>, vector<8x128xf32>
    tpu.vector_store %arg4[%c0_9, %c0_10], %36 {strides = array<i32>} : memref<8x128xf32, #tpu.memory_space<vmem>>, vector<8x128xf32>,
    return
  }
  func.func @transform_0(%arg0: i32) -> (i32, i32) {
    %c0_i32 = arith.constant 0 : i32
    %c0_i32_0 = arith.constant 0 : i32
    %c0_i32_1 = arith.constant 0 : i32
    return %c0_i32, %c0_i32_0 : i32, i32
  }
  func.func @transform_1(%arg0: i32) -> (i32, i32) {
    %c0_i32 = arith.constant 0 : i32
    %c0_i32_0 = arith.constant 0 : i32
    %c0_i32_1 = arith.constant 0 : i32
    return %c0_i32, %c0_i32_0 : i32, i32
  }
  func.func @transform_2(%arg0: i32) -> (i32, i32) {
    %c0_i32 = arith.constant 0 : i32
    %c0_i32_0 = arith.constant 0 : i32
    %c0_i32_1 = arith.constant 0 : i32
    return %c0_i32, %c0_i32_0 : i32, i32
  }
  func.func @transform_3(%arg0: i32) -> (i32, i32) {
    %c0_i32 = arith.constant 0 : i32
    %c0_i32_0 = arith.constant 0 : i32
    %c0_i32_1 = arith.constant 0 : i32
    return %c0_i32, %c0_i32_0 : i32, i32
  }
}

</mosaic_0001>

<llo_original>
// kernel: dblock_forward.1
$region0: #{dblock_forward.1}
  #allocation0 [shape = 'u32[]', space=smem, size = 0x4, offset = 0x4, fixed_abs, tag = 'smem constant byte address 0x4 - core index']
  #allocation1 [shape = 'u32[144,128]{1,0:T(1,128)}', space=vmem, size = 0x12000, scoped, tag = 'internal scratch']
  %s0 = inlined_call_operand.vmem [shape: f32[40,512], index: 0, kind: input, shape index: {}]
  %s1 = inlined_call_operand.vmem [shape: f32[8,40], index: 1, kind: input, shape index: {}]
  %s2 = inlined_call_operand.vmem [shape: f32[8,1], index: 2, kind: input, shape index: {}]
  %s3 = inlined_call_operand.vmem [shape: f32[8,128], index: 3, kind: output, shape index: {}]
  %s4 = sld [smem:[#allocation0]]
  $region22: #{dblock_forward.1} parent=0
    _
  %s6 = ssub.s32 1, %s4
  %s7 = scalar_select 0, %s6, %s4
  // Predicated region
  $region2: #{dblock_forward.1} parent=0 // pred_check
    _
  $region3: #{dblock_forward.1} parent=0 // pred_check_branch
    %9 = sbr.rel (0) target = $region5
  $region4: #{dblock_forward.1} parent=0 // pred_region
    _
  $region5: #{dblock_forward.1} parent=0 // pred_fallthru
    _
  // Predicated region
  $region6: #{dblock_forward.1} parent=0 // pred_check
    _
  $region7: #{dblock_forward.1} parent=0 // pred_check_branch
    %11 = sbr.rel (0) target = $region9
  $region8: #{dblock_forward.1} parent=0 // pred_region
    _
  $region9: #{dblock_forward.1} parent=0 // pred_fallthru
    _
  // Predicated region
  $region10: #{dblock_forward.1} parent=0 // pred_check
    _
  $region11: #{dblock_forward.1} parent=0 // pred_check_branch
    %13 = sbr.rel (0) target = $region13
  $region12: #{dblock_forward.1} parent=0 // pred_region
    _
  $region13: #{dblock_forward.1} parent=0 // pred_fallthru
    _
  %v14 = vld [vmem:[%s1] sm:$0xff]
  %v15 = vld [vmem:[%s0] sm:$0xff]
  %v16 = vld [vmem:[%s0 + $0x8] sm:$0xff]
  %v17 = vld [vmem:[%s0 + $0x10] sm:$0xff]
  %v18 = vld [vmem:[%s0 + $0x18] sm:$0xff]
  %v19 = vld [vmem:[%s0 + $0x20] sm:$0xff]
  %v20 = vld [vmem:[%s0 + $0x28] sm:$0xff]
  %v21 = vld [vmem:[%s0 + $0x30] sm:$0xff]
  %v22 = vld [vmem:[%s0 + $0x38] sm:$0xff]
  %v23 = vld [vmem:[%s0 + $0x40] sm:$0xff]
  %v24 = vld [vmem:[%s0 + $0x48] sm:$0xff]
  %v25 = vld [vmem:[%s0 + $0x50] sm:$0xff]
  %v26 = vld [vmem:[%s0 + $0x58] sm:$0xff]
  %v27 = vld [vmem:[%s0 + $0x60] sm:$0xff]
  %v28 = vld [vmem:[%s0 + $0x68] sm:$0xff]
  %v29 = vld [vmem:[%s0 + $0x70] sm:$0xff]
  %v30 = vld [vmem:[%s0 + $0x78] sm:$0xff]
  %v31 = vld [vmem:[%s0 + $0x80] sm:$0xff]
  %v32 = vld [vmem:[%s0 + $0x88] sm:$0xff]
  %v33 = vld [vmem:[%s0 + $0x90] sm:$0xff]
  %v34 = vld [vmem:[%s0 + $0x98] sm:$0xff]
  %v35 = vld [vmem:[%s2] sm:$0xff]
  %37 = vset.pattern.permute.xlu0 0
  %38 = vperm.xlu0 %37, %v35
  %v39 = vpop.permute.xlu0 %38
  %vm41 = vcmask 326656
  %v43 = vsel %vm41, %v14, 0
  %45 = vmatprep.subr.mxu0 %v16
  %46 = vmatpush1.msra.mxu0 %v15
  %47 = vmatprep.subr.mxu0 %v20
  %48 = vmatpush1.msra.mxu0 %v19
  %49 = vmatprep.subr.mxu0 %v24
  %50 = vmatpush1.msra.mxu0 %v23
  %51 = vmatprep.subr.mxu0 %v28
  %52 = vmatpush1.msra.mxu0 %v27
  %53 = vmatprep.subr.mxu0 %v32
  %54 = vmatpush1.msra.mxu0 %v31
  %55 = vmatprep.subr.mxu0 0.0
  %56 = vmatpush1.msra.mxu0 0.0
  %57 = vmatprep.subr.mxu0 0.0
  %58 = vmatpush1.msra.mxu0 0.0
  %59 = vmatprep.subr.mxu0 0.0
  %60 = vmatpush1.msra.mxu0 0.0
  %61 = vmatprep.subr.mxu0 0.0
  %62 = vmatpush1.msra.mxu0 0.0
  %63 = vmatprep.subr.mxu0 0.0
  %64 = vmatpush1.msra.mxu0 0.0
  %65 = vmatprep.subr.mxu0 0.0
  %66 = vmatpush1.msra.mxu0 0.0
  %67 = vmatprep.subr.mxu0 0.0
  %68 = vmatpush1.msra.mxu0 0.0
  %69 = vmatprep.subr.mxu0 0.0
  %70 = vmatpush1.msra.mxu0 0.0
  %71 = vmatprep.subr.mxu0 0.0
  %72 = vmatpush1.msra.mxu0 0.0
  %73 = vmatprep.subr.mxu0 0.0
  %74 = vmatpush1.msra.mxu0 0.0
  %75 = vmatprep.subr.mxu0 0.0
  %76 = vmatpush1.msra.mxu0 0.0
  %77 = vmatprep.subr.mxu0 0.0
  %78 = vmatpush1.msra.mxu0 0.0
  %79 = vmatprep.subr.mxu0 0.0
  %80 = vmatpush1.msra.mxu0 0.0
  %81 = vmatprep.subr.mxu0 0.0
  %82 = vmatpush1.msra.mxu0 0.0
  %83 = vmatprep.subr.mxu0 0.0
  %84 = vmatpush1.msra.mxu0 0.0
  %85 = vmatprep.subr.mxu0 0.0
  %86 = vmatpush1.msra.mxu0 0.0
  %87 = vmatprep.subr.mxu0 0.0
  %88 = vmatpush1.msra.mxu0 0.0
  %89 = vmatprep.subr.mxu0 0.0
  %90 = vmatpush1.msra.mxu0 0.0
  %91 = vmatprep.subr.mxu0 0.0
  %92 = vmatpush1.msra.mxu0 0.0
  %93 = vmatprep.subr.mxu0 0.0
  %94 = vmatpush1.msra.mxu0 0.0
  %95 = vmatprep.subr.mxu0 0.0
  %96 = vmatpush1.msra.mxu0 0.0
  %97 = vmatprep.subr.mxu0 0.0
  %98 = vmatpush1.msra.mxu0 0.0
  %99 = vmatprep.subr.mxu0 0.0
  %100 = vmatpush1.msra.mxu0 0.0
  %101 = vmatprep.subr.mxu0 0.0
  %102 = vmatpush1.msra.mxu0 0.0
  %103 = vmatprep.subr.mxu0 0.0
  %104 = vmatpush1.msra.mxu0 0.0
  %105 = vmatprep.subr.mxu0 0.0
  %106 = vmatpush1.msra.mxu0 0.0
  %107 = vmatprep.subr.mxu0 0.0
  %108 = vmatpush1.msra.mxu0 0.0
  %109 = vmatprep.mubr.f32.mxu0 0.0
  %110 = vmatmul.mubr.f32.gmra.mrb[0].mxu0 %v43
  %v111 = vpop.f32.mrb[0].mxu0
  %v112 = vadd.f32 %v39, %v111
  %v113 = vpop.f32.mrb[0].mxu0
  %v114 = vadd.f32 %v39, %v113
  %115 = vdwg.mxu0
  %116 = vmatprep.subr.mxu0 %v18
  %117 = vmatpush1.msra.mxu0 %v17
  %118 = vmatprep.subr.mxu0 %v22
  %119 = vmatpush1.msra.mxu0 %v21
  %120 = vmatprep.subr.mxu0 %v26
  %121 = vmatpush1.msra.mxu0 %v25
  %122 = vmatprep.subr.mxu0 %v30
  %123 = vmatpush1.msra.mxu0 %v29
  %124 = vmatprep.subr.mxu0 %v34
  %125 = vmatpush1.msra.mxu0 %v33
  %126 = vmatprep.subr.mxu0 0.0
  %127 = vmatpush1.msra.mxu0 0.0
  %128 = vmatprep.subr.mxu0 0.0
  %129 = vmatpush1.msra.mxu0 0.0
  %130 = vmatprep.subr.mxu0 0.0
  %131 = vmatpush1.msra.mxu0 0.0
  %132 = vmatprep.subr.mxu0 0.0
  %133 = vmatpush1.msra.mxu0 0.0
  %134 = vmatprep.subr.mxu0 0.0
  %135 = vmatpush1.msra.mxu0 0.0
  %136 = vmatprep.subr.mxu0 0.0
  %137 = vmatpush1.msra.mxu0 0.0
  %138 = vmatprep.subr.mxu0 0.0
  %139 = vmatpush1.msra.mxu0 0.0
  %140 = vmatprep.subr.mxu0 0.0
  %141 = vmatpush1.msra.mxu0 0.0
  %142 = vmatprep.subr.mxu0 0.0
  %143 = vmatpush1.msra.mxu0 0.0
  %144 = vmatprep.subr.mxu0 0.0
  %145 = vmatpush1.msra.mxu0 0.0
  %146 = vmatprep.subr.mxu0 0.0
  %147 = vmatpush1.msra.mxu0 0.0
  %148 = vmatprep.subr.mxu0 0.0
  %149 = vmatpush1.msra.mxu0 0.0
  %150 = vmatprep.subr.mxu0 0.0
  %151 = vmatpush1.msra.mxu0 0.0
  %152 = vmatprep.subr.mxu0 0.0
  %153 = vmatpush1.msra.mxu0 0.0
  %154 = vmatprep.subr.mxu0 0.0
  %155 = vmatpush1.msra.mxu0 0.0
  %156 = vmatprep.subr.mxu0 0.0
  %157 = vmatpush1.msra.mxu0 0.0
  %158 = vmatprep.subr.mxu0 0.0
  %159 = vmatpush1.msra.mxu0 0.0
  %160 = vmatprep.subr.mxu0 0.0
  %161 = vmatpush1.msra.mxu0 0.0
  %162 = vmatprep.subr.mxu0 0.0
  %163 = vmatpush1.msra.mxu0 0.0
  %164 = vmatprep.subr.mxu0 0.0
  %165 = vmatpush1.msra.mxu0 0.0
  %166 = vmatprep.subr.mxu0 0.0
  %167 = vmatpush1.msra.mxu0 0.0
  %168 = vmatprep.subr.mxu0 0.0
  %169 = vmatpush1.msra.mxu0 0.0
  %170 = vmatprep.subr.mxu0 0.0
  %171 = vmatpush1.msra.mxu0 0.0
  %172 = vmatprep.subr.mxu0 0.0
  %173 = vmatpush1.msra.mxu0 0.0
  %174 = vmatprep.subr.mxu0 0.0
  %175 = vmatpush1.msra.mxu0 0.0
  %176 = vmatprep.subr.mxu0 0.0
  %177 = vmatpush1.msra.mxu0 0.0
  %178 = vmatprep.subr.mxu0 0.0
  %179 = vmatpush1.msra.mxu0 0.0
  %180 = vmatprep.mubr.f32.mxu0 0.0
  %181 = vmatmul.mubr.f32.gmra.mrb[0].mxu0 %v43
  %v182 = vpop.f32.mrb[0].mxu0
  %v183 = vadd.f32 %v39, %v182
  %v184 = vpop.f32.mrb[0].mxu0
  %v185 = vadd.f32 %v39, %v184
  %186 = vdwg.mxu0
  %v187 = vmax.f32 %v112, 0.0
  %v188 = vmax.f32 %v114, 0.0
  %v189 = vmax.f32 %v183, 0.0
  %v190 = vmax.f32 %v185, 0.0
  %v191 = vlaneseq
  %v192 = vshrl.u32 %v191, 7
  %v193 = vlaneseq
  %v194 = vand.u32 %v193, 127
  %v195 = vsub.s32 %v192, 4
  %vm196 = vcmp.ge.s32.totalorder %v194, %v195
  %v197 = vadd.s32 %v192, 3
  %vm198 = vcmp.le.s32.totalorder %v194, %v197
  %vm199 = vmand %vm196, %vm198
  %v200 = vsel %vm199, 1, 0
  %v201 = vcvt.s32.f32 %v200
  %v202 = vmul.f32 %v187, %v187
  %v203 = vmul.f32 %v188, %v188
  %v204 = vmul.f32 %v189, %v189
  %v205 = vmul.f32 %v190, %v190
  %vm206 = vcmask 64512
  %v208 = vsel %vm206, %v201, 0
  %210 = vmatprep.subr.mxu0 %v203
  %211 = vmatpush1.msra.mxu0 %v202
  %212 = vmatprep.subr.mxu0 0.0
  %213 = vmatpush1.msra.mxu0 0.0
  %214 = vmatprep.subr.mxu0 0.0
  %215 = vmatpush1.msra.mxu0 0.0
  %216 = vmatprep.subr.mxu0 0.0
  %217 = vmatpush1.msra.mxu0 0.0
  %218 = vmatprep.subr.mxu0 0.0
  %219 = vmatpush1.msra.mxu0 0.0
  %220 = vmatprep.subr.mxu0 0.0
  %221 = vmatpush1.msra.mxu0 0.0
  %222 = vmatprep.subr.mxu0 0.0
  %223 = vmatpush1.msra.mxu0 0.0
  %224 = vmatprep.subr.mxu0 0.0
  %225 = vmatpush1.msra.mxu0 0.0
  %226 = vmatprep.subr.mxu0 0.0
  %227 = vmatpush1.msra.mxu0 0.0
  %228 = vmatprep.subr.mxu0 0.0
  %229 = vmatpush1.msra.mxu0 0.0
  %230 = vmatprep.subr.mxu0 0.0
  %231 = vmatpush1.msra.mxu0 0.0
  %232 = vmatprep.subr.mxu0 0.0
  %233 = vmatpush1.msra.mxu0 0.0
  %234 = vmatprep.subr.mxu0 0.0
  %235 = vmatpush1.msra.mxu0 0.0
  %236 = vmatprep.subr.mxu0 0.0
  %237 = vmatpush1.msra.mxu0 0.0
  %238 = vmatprep.subr.mxu0 0.0
  %239 = vmatpush1.msra.mxu0 0.0
  %240 = vmatprep.subr.mxu0 0.0
  %241 = vmatpush1.msra.mxu0 0.0
  %242 = vmatprep.subr.mxu0 0.0
  %243 = vmatpush1.msra.mxu0 0.0
  %244 = vmatprep.subr.mxu0 0.0
  %245 = vmatpush1.msra.mxu0 0.0
  %246 = vmatprep.subr.mxu0 0.0
  %247 = vmatpush1.msra.mxu0 0.0
  %248 = vmatprep.subr.mxu0 0.0
  %249 = vmatpush1.msra.mxu0 0.0
  %250 = vmatprep.subr.mxu0 0.0
  %251 = vmatpush1.msra.mxu0 0.0
  %252 = vmatprep.subr.mxu0 0.0
  %253 = vmatpush1.msra.mxu0 0.0
  %254 = vmatprep.subr.mxu0 0.0
  %255 = vmatpush1.msra.mxu0 0.0
  %256 = vmatprep.subr.mxu0 0.0
  %257 = vmatpush1.msra.mxu0 0.0
  %258 = vmatprep.subr.mxu0 0.0
  %259 = vmatpush1.msra.mxu0 0.0
  %260 = vmatprep.subr.mxu0 0.0
  %261 = vmatpush1.msra.mxu0 0.0
  %262 = vmatprep.subr.mxu0 0.0
  %263 = vmatpush1.msra.mxu0 0.0
  %264 = vmatprep.subr.mxu0 0.0
  %265 = vmatpush1.msra.mxu0 0.0
  %266 = vmatprep.subr.mxu0 0.0
  %267 = vmatpush1.msra.mxu0 0.0
  %268 = vmatprep.subr.mxu0 0.0
  %269 = vmatpush1.msra.mxu0 0.0
  %270 = vmatprep.subr.mxu0 0.0
  %271 = vmatpush1.msra.mxu0 0.0
  %272 = vmatprep.subr.mxu0 0.0
  %273 = vmatpush1.msra.mxu0 0.0
  %274 = vmatprep.mubr.f32.mxu0 0.0
  %275 = vmatmul.mubr.f32.gmra.mrb[0].mxu0 %v208
  %v276 = vpop.f32.mrb[0].mxu0
  %v277 = vadd.f32 0.0, %v276
  %v278 = vpop.f32.mrb[0].mxu0
  %v279 = vadd.f32 0.0, %v278
  %280 = vdwg.mxu0
  %281 = vmatprep.subr.mxu0 %v205
  %282 = vmatpush1.msra.mxu0 %v204
  %283 = vmatprep.subr.mxu0 0.0
  %284 = vmatpush1.msra.mxu0 0.0
  %285 = vmatprep.subr.mxu0 0.0
  %286 = vmatpush1.msra.mxu0 0.0
  %287 = vmatprep.subr.mxu0 0.0
  %288 = vmatpush1.msra.mxu0 0.0
  %289 = vmatprep.subr.mxu0 0.0
  %290 = vmatpush1.msra.mxu0 0.0
  %291 = vmatprep.subr.mxu0 0.0
  %292 = vmatpush1.msra.mxu0 0.0
  %293 = vmatprep.subr.mxu0 0.0
  %294 = vmatpush1.msra.mxu0 0.0
  %295 = vmatprep.subr.mxu0 0.0
  %296 = vmatpush1.msra.mxu0 0.0
  %297 = vmatprep.subr.mxu0 0.0
  %298 = vmatpush1.msra.mxu0 0.0
  %299 = vmatprep.subr.mxu0 0.0
  %300 = vmatpush1.msra.mxu0 0.0
  %301 = vmatprep.subr.mxu0 0.0
  %302 = vmatpush1.msra.mxu0 0.0
  %303 = vmatprep.subr.mxu0 0.0
  %304 = vmatpush1.msra.mxu0 0.0
  %305 = vmatprep.subr.mxu0 0.0
  %306 = vmatpush1.msra.mxu0 0.0
  %307 = vmatprep.subr.mxu0 0.0
  %308 = vmatpush1.msra.mxu0 0.0
  %309 = vmatprep.subr.mxu0 0.0
  %310 = vmatpush1.msra.mxu0 0.0
  %311 = vmatprep.subr.mxu0 0.0
  %312 = vmatpush1.msra.mxu0 0.0
  %313 = vmatprep.subr.mxu0 0.0
  %314 = vmatpush1.msra.mxu0 0.0
  %315 = vmatprep.subr.mxu0 0.0
  %316 = vmatpush1.msra.mxu0 0.0
  %317 = vmatprep.subr.mxu0 0.0
  %318 = vmatpush1.msra.mxu0 0.0
  %319 = vmatprep.subr.mxu0 0.0
  %320 = vmatpush1.msra.mxu0 0.0
  %321 = vmatprep.subr.mxu0 0.0
  %322 = vmatpush1.msra.mxu0 0.0
  %323 = vmatprep.subr.mxu0 0.0
  %324 = vmatpush1.msra.mxu0 0.0
  %325 = vmatprep.subr.mxu0 0.0
  %326 = vmatpush1.msra.mxu0 0.0
  %327 = vmatprep.subr.mxu0 0.0
  %328 = vmatpush1.msra.mxu0 0.0
  %329 = vmatprep.subr.mxu0 0.0
  %330 = vmatpush1.msra.mxu0 0.0
  %331 = vmatprep.subr.mxu0 0.0
  %332 = vmatpush1.msra.mxu0 0.0
  %333 = vmatprep.subr.mxu0 0.0
  %334 = vmatpush1.msra.mxu0 0.0
  %335 = vmatprep.subr.mxu0 0.0
  %336 = vmatpush1.msra.mxu0 0.0
  %337 = vmatprep.subr.mxu0 0.0
  %338 = vmatpush1.msra.mxu0 0.0
  %339 = vmatprep.subr.mxu0 0.0
  %340 = vmatpush1.msra.mxu0 0.0
  %341 = vmatprep.subr.mxu0 0.0
  %342 = vmatpush1.msra.mxu0 0.0
  %343 = vmatprep.subr.mxu0 0.0
  %344 = vmatpush1.msra.mxu0 0.0
  %345 = vmatprep.mubr.f32.mxu0 0.0
  %346 = vmatmul.mubr.f32.gmra.mrb[0].mxu0 %v208
  %v347 = vpop.f32.mrb[0].mxu0
  %v348 = vadd.f32 0.0, %v347
  %v349 = vpop.f32.mrb[0].mxu0
  %v350 = vadd.f32 0.0, %v349
  %351 = vdwg.mxu0
  %v352 = vmul.f32 %v277, 1.25e-05
  %v353 = vmul.f32 %v279, 1.25e-05
  %v354 = vmul.f32 %v348, 1.25e-05
  %v355 = vmul.f32 %v350, 1.25e-05
  %v356 = vadd.f32 %v352, 1.0
  %v357 = vadd.f32 %v353, 1.0
  %v358 = vadd.f32 %v354, 1.0
  %v359 = vadd.f32 %v355, 1.0
  %v360 = vrsqrt.pop %v356
  %v361 = vrsqrt.pop %v357
  %v362 = vrsqrt.pop %v358
  %v363 = vrsqrt.pop %v359
  %v364 = vrsqrt.pop %v356
  %v365 = vmul.f32 %v356, %v364
  %vm366 = vcmp.eq.f32.partialorder %v356, inf
  %v367 = vsel %vm366, %v356, %v365
  %vm368 = vcmp.eq.f32.partialorder %v356, 0.0
  %v369 = vand.u32 %v356, 2147483648
  %v370 = vsel %vm368, %v369, %v367
  %v371 = vrsqrt.pop %v357
  %v372 = vmul.f32 %v357, %v371
  %vm373 = vcmp.eq.f32.partialorder %v357, inf
  %v374 = vsel %vm373, %v357, %v372
  %vm375 = vcmp.eq.f32.partialorder %v357, 0.0
  %v376 = vand.u32 %v357, 2147483648
  %v377 = vsel %vm375, %v376, %v374
  %v378 = vrsqrt.pop %v358
  %v379 = vmul.f32 %v358, %v378
  %vm380 = vcmp.eq.f32.partialorder %v358, inf
  %v381 = vsel %vm380, %v358, %v379
  %vm382 = vcmp.eq.f32.partialorder %v358, 0.0
  %v383 = vand.u32 %v358, 2147483648
  %v384 = vsel %vm382, %v383, %v381
  %v385 = vrsqrt.pop %v359
  %v386 = vmul.f32 %v359, %v385
  %vm387 = vcmp.eq.f32.partialorder %v359, inf
  %v388 = vsel %vm387, %v359, %v386
  %vm389 = vcmp.eq.f32.partialorder %v359, 0.0
  %v390 = vand.u32 %v359, 2147483648
  %v391 = vsel %vm389, %v390, %v388
  %v392 = vrsqrt.pop %v370
  %v393 = vrsqrt.pop %v377
  %v394 = vrsqrt.pop %v384
  %v395 = vrsqrt.pop %v391
  %v396 = vmul.f32 %v360, %v392
  %v397 = vmul.f32 %v361, %v393
  %v398 = vmul.f32 %v362, %v394
  %v399 = vmul.f32 %v363, %v395
  %v400 = vmul.f32 %v187, %v396
  %v401 = vmul.f32 %v188, %v397
  %v402 = vmul.f32 %v189, %v398
  %v403 = vmul.f32 %v190, %v399
  %v404 = vmax.f32 %v400, %v401
  %v405 = vmax.f32 %v402, %v403
  %v406 = vmax.f32 %v404, %v405
  %407 = vst [vmem:[%s3] sm:$0xff] %v406
  // Predicated region
  $region14: #{dblock_forward.1} parent=0 // pred_check
    _
  $region15: #{dblock_forward.1} parent=0 // pred_check_branch
    %409 = sbr.rel (0) target = $region17
  $region16: #{dblock_forward.1} parent=0 // pred_region
    _
  $region17: #{dblock_forward.1} parent=0 // pred_fallthru
    _
  // Predicated region
  $region18: #{dblock_forward.1} parent=0 // pred_check
    _
  $region19: #{dblock_forward.1} parent=0 // pred_check_branch
    %411 = sbr.rel (0) target = $region21
  $region20: #{dblock_forward.1} parent=0 // pred_region
    _
  $region21: #{dblock_forward.1} parent=0 // pred_fallthru
    _

</llo_original>
